<compile_context>
chip_gen: v6e
topology: v6e:2x2x1
jax: 0.10.0
libtpu: 0.0.40
codegen_flags: <defaults>
</compile_context>

<pallas_src>
import functools

import jax
import jax.numpy as jnp
from jax.experimental import pallas as pl
from jax.experimental.pallas import tpu as pltpu

_LANE = 128                                   # lane-dense feature padding
_SUPPORT_RESIDENT_BUDGET = 16 * 1024 * 1024   # bytes (assumes 2 buffers)
_VMEM_LIMIT_FLOOR = 32 * 1024 * 1024
_VMEM_LIMIT_CAP = 40 * 1024 * 1024            # stays below v7x's 64 MiB VMEM


def _round_up(x, m):
    return (x + m - 1) // m * m


def _choose_tiling(n, tile=None):
    """Pick (n_padded, tile).  Bigger tiles amortize the per-step overhead and
    enlarge the adj DMAs; we also try to keep >= 2 row tiles so the 'parallel'
    axis can shard across two TensorCores (v7x)."""
    if tile is not None:
        return _round_up(n, max(tile, 128)), tile
    n_p = _round_up(n, 256) if n > 128 else _round_up(n, 128)
    for t in (512, 256, 128):
        if n_p % t == 0 and n_p // t >= 2:
            return n_p, t
    return n_p, 128


# ---------------------------------------------------------------------------
# Deterministic dropout mask (stateless u32 hash; works on TPU and interpret)
# ---------------------------------------------------------------------------
def _hash_u32(x):
    x = x ^ (x >> jnp.uint32(16))
    x = x * jnp.uint32(0x7FEB352D)
    x = x ^ (x >> jnp.uint32(15))
    x = x * jnp.uint32(0x846CA68B)
    x = x ^ (x >> jnp.uint32(16))
    return x


def _dropout_keep_mask(shape, row0, num_cols, seed, p):
    """Per-element keep mask from the *global* element id -> independent of the
    tiling.  All arithmetic in uint32 (no int32 wrap)."""
    rows = (row0 + jax.lax.broadcasted_iota(jnp.int32, shape, 0)).astype(jnp.uint32)
    cols = jax.lax.broadcasted_iota(jnp.int32, shape, 1).astype(jnp.uint32)
    eid = rows * jnp.uint32(num_cols) + cols
    bits = _hash_u32(eid ^ jnp.uint32(seed & 0xFFFFFFFF))
    threshold = jnp.uint32(min(int(round(p * (2.0 ** 32))), 0xFFFFFFFF))
    return bits >= threshold


# ---------------------------------------------------------------------------
# Kernel 1: support = x @ W   (bf16 MXU operands, bf16 output)
# ---------------------------------------------------------------------------
def _xw_kernel(x_ref, w_ref, o_ref):
    # Cast to bf16 *inside* the kernel: single-pass MXU path without an extra
    # XLA cast pass over x / W in HBM.
    x = x_ref[...].astype(jnp.bfloat16)
    w = w_ref[...].astype(jnp.bfloat16)
    o_ref[...] = jnp.dot(x, w, preferred_element_type=jnp.float32).astype(o_ref.dtype)


def _compute_support(x_p, w_p, *, tile_m):
    # NOTE: assumes F_in_p x F_out_p (the weight) fits VMEM; fine for typical
    # GCN feature sizes.
    n_p, f_in_p = x_p.shape
    f_out_p = w_p.shape[1]
    return pl.pallas_call(
        _xw_kernel,
        out_shape=jax.ShapeDtypeStruct((n_p, f_out_p), jnp.bfloat16),
        grid=(n_p // tile_m,),
        in_specs=[
            pl.BlockSpec((tile_m, f_in_p), lambda i: (i, 0)),
            pl.BlockSpec((f_in_p, f_out_p), lambda i: (0, 0)),
        ],
        out_specs=pl.BlockSpec((tile_m, f_out_p), lambda i: (i, 0)),
        compiler_params=pltpu.CompilerParams(dimension_semantics=("parallel",)),
    )(x_p, w_p)


# ---------------------------------------------------------------------------
# Kernel 2: out = adj @ support + b  (+ ReLU + dropout for hidden layers)
# grid = (N/tile_n, N/tile_k); k innermost reduction; block-sparse skip via
# scalar prefetch (blk_ref remaps empty blocks, nz_ref gates the dot).
# ---------------------------------------------------------------------------
def _adj_matmul_kernel(blk_ref, nz_ref, adj_ref, s_ref, b_ref, o_ref, *,
                       apply_act, dropout_p, seed, tile_n, tile_k, f_out_p,
                       num_k, support_resident):
    # All pallas index primitives stay at the TOP level of the kernel body
    # (never inside pl.when closures) -- the branches capture the values.
    i = pl.program_id(0)
    k = pl.program_id(1)
    row0 = i * tile_n
    k_start = k * tile_k
    nonzero = nz_ref[i * num_k + k]

    @pl.when(k == 0)
    def _init():
        # Initialize the resident f32 output block with the broadcast bias
        # (removes the separate accumulator scratch + final copy).
        o_ref[...] = jnp.broadcast_to(b_ref[...], o_ref.shape)

    @pl.when(nonzero != 0)
    def _accumulate():
        if support_resident:
            s = s_ref[pl.ds(k_start, tile_k), :]   # slice of VMEM-resident support
        else:
            s = s_ref[...]
        # bf16 x bf16 -> f32 accumulate on the MXU, directly into o_ref.
        o_ref[...] += jnp.dot(adj_ref[...], s, preferred_element_type=jnp.float32)

    if apply_act:
        @pl.when(k == num_k - 1)
        def _epilogue():
            out = jnp.maximum(o_ref[...], 0.0)                 # ReLU
            if dropout_p > 0.0:                                # F.dropout (training)
                keep = _dropout_keep_mask(out.shape, row0, f_out_p, seed, dropout_p)
                out = jnp.where(keep,
                                out * jnp.float32(1.0 / (1.0 - dropout_p)),
                                jnp.float32(0.0))
            o_ref[...] = out


def gcn_layer(h_p, adj_p, blkmap, nzmap, w_p, b_p, *, apply_act, dropout_p,
              seed, tile_n, tile_k):
    """One GCN layer on padded inputs.  adj_p (N_p,N_p) bf16, h_p (N_p,F_in_p)
    f32, w_p (F_in_p,F_out_p) f32, b_p (1,F_out_p) f32 -> (N_p,F_out_p) f32."""
    n_p = adj_p.shape[0]
    f_out_p = w_p.shape[1]
    num_i, num_k = n_p // tile_n, n_p // tile_k

    # support computed once per layer (never re-materialized per adj tile)
    support = _compute_support(h_p, w_p, tile_m=tile_n)        # (N_p,F_out_p) bf16

    # Keep the whole support matrix VMEM-resident when it fits: its index_map
    # is constant, so it is fetched exactly once -> the adjacency is the only
    # large HBM stream.  Otherwise fall back to k-tiled streaming.
    support_resident = (2 * n_p * f_out_p * 2) <= _SUPPORT_RESIDENT_BUDGET
    if support_resident:
        s_spec = pl.BlockSpec((n_p, f_out_p), lambda i, k, bm, nz: (0, 0))
        support_bytes = 2 * n_p * f_out_p * 2
    else:
        s_spec = pl.BlockSpec((tile_k, f_out_p), lambda i, k, bm, nz: (k, 0))
        support_bytes = 2 * tile_k * f_out_p * 2

    kernel = functools.partial(
        _adj_matmul_kernel, apply_act=apply_act, dropout_p=float(dropout_p),
        seed=int(seed), tile_n=tile_n, tile_k=tile_k, f_out_p=f_out_p,
        num_k=num_k, support_resident=support_resident)

    vmem_est = (2 * tile_n * tile_k * 2        # adj double buffer (bf16)
                + support_bytes                # support buffers (bf16)
                + 2 * tile_n * f_out_p * 4     # output block buffers (f32)
                + 2 * f_out_p * 4)             # bias
    vmem_limit = int(min(max(2 * vmem_est + (4 << 20), _VMEM_LIMIT_FLOOR),
                         _VMEM_LIMIT_CAP))

    return pl.pallas_call(
        kernel,
        out_shape=jax.ShapeDtypeStruct((n_p, f_out_p), jnp.float32),
        grid_spec=pltpu.PrefetchScalarGridSpec(
            num_scalar_prefetch=2,
            grid=(num_i, num_k),
            in_specs=[
                # Empty adj blocks are remapped to the previously fetched block
                # index -> no new DMA; the dot for them is skipped in-kernel.
                pl.BlockSpec((tile_n, tile_k),
                             lambda i, k, bm, nz: (i, bm[i * num_k + k])),
                s_spec,
                pl.BlockSpec((1, f_out_p), lambda i, k, bm, nz: (0, 0)),
            ],
            out_specs=pl.BlockSpec((tile_n, f_out_p),
                                   lambda i, k, bm, nz: (i, 0)),
        ),
        compiler_params=pltpu.CompilerParams(
            dimension_semantics=("parallel", "arbitrary"),
            vmem_limit_bytes=vmem_limit),
    )(blkmap, nzmap, adj_p, support, b_p)


# ---------------------------------------------------------------------------
# Adjacency preparation (done ONCE per forward, shared by all layers)
# ---------------------------------------------------------------------------
def prepare_adj(adj, n_p, tile_n, tile_k):
    """Pad + bf16-cast the dense(ified) adjacency and build block-sparsity
    metadata: nz[i,k] (block has any nonzero) and blkmap[i,k] (column-block to
    DMA; empty blocks alias the most recent nonzero block, or 0)."""
    n = adj.shape[0]
    adj_p = jnp.pad(adj, ((0, n_p - n), (0, n_p - n))).astype(jnp.bfloat16)
    nb_i, nb_k = n_p // tile_n, n_p // tile_k
    blocks = adj_p.reshape(nb_i, tile_n, nb_k, tile_k)
    nz = jnp.any(blocks != 0, axis=(1, 3))                       # (nb_i, nb_k)
    kidx = jnp.broadcast_to(jnp.arange(nb_k, dtype=jnp.int32)[None, :],
                            (nb_i, nb_k))
    last_nz = jax.lax.cummax(jnp.where(nz, kidx, jnp.int32(-1)), axis=1)
    blkmap = jnp.maximum(last_nz, 0).astype(jnp.int32).reshape(-1)
    nzmap = nz.astype(jnp.int32).reshape(-1)
    return adj_p, blkmap, nzmap


# ---------------------------------------------------------------------------
# Parameters and forward pass (mirrors GCN.forward)
# ---------------------------------------------------------------------------
def init_gcn_params(key, input_dim, hidden_dim, output_dim, num_layers=2):
    dims = [input_dim] + [hidden_dim] * (num_layers - 1) + [output_dim]
    params = []
    for i in range(num_layers):
        key, kw, kb = jax.random.split(key, 3)
        fan_in, fan_out = dims[i], dims[i + 1]
        stdv = 1.0 / jnp.sqrt(jnp.float32(fan_out))
        w = jax.random.uniform(kw, (fan_in, fan_out), jnp.float32, -stdv, stdv)
        b = jax.random.uniform(kb, (1, fan_out), jnp.float32, -stdv, stdv)
        params.append((w, b))
    return params


def gcn_forward(x, adj, params, *, dropout_p, seed=0, tile=None):
    """layer -> (ReLU -> dropout) except for the last layer."""
    n, f_in = x.shape
    n_p, tile_n = _choose_tiling(n, tile)
    tile_k = tile_n
    f_in_p = _round_up(f_in, _LANE)

    x_p = jnp.pad(x, ((0, n_p - n), (0, f_in_p - f_in)))
    # Prepared once and reused by every layer (hoisted out of the layer loop).
    adj_p, blkmap, nzmap = prepare_adj(adj, n_p, tile_n, tile_k)

    num_layers = len(params)
    h = x_p
    for li, (w, b) in enumerate(params):
        f_i, f_o = w.shape
        f_i_p, f_o_p = _round_up(f_i, _LANE), _round_up(f_o, _LANE)
        w_p = jnp.pad(w, ((0, f_i_p - f_i), (0, f_o_p - f_o)))
        b_p = jnp.pad(b, ((0, 0), (0, f_o_p - f_o)))
        hidden = li != num_layers - 1
        h = gcn_layer(h, adj_p, blkmap, nzmap, w_p, b_p,
                      apply_act=hidden,
                      dropout_p=dropout_p if hidden else 0.0,
                      seed=seed + li, tile_n=tile_n, tile_k=tile_k)
    f_out = params[-1][0].shape[1]
    return h[:n, :f_out]


def _reference_forward(x, adj, params, *, dropout_p, seed, tile=None):
    """Pure-jnp reference mirroring the padded / bf16 / hash-dropout pipeline."""
    n, f_in = x.shape
    n_p, _ = _choose_tiling(n, tile)
    f_in_p = _round_up(f_in, _LANE)
    h = jnp.pad(x, ((0, n_p - n), (0, f_in_p - f_in)))
    adj_f32 = (jnp.pad(adj, ((0, n_p - n), (0, n_p - n)))
               .astype(jnp.bfloat16).astype(jnp.float32))
    num_layers = len(params)
    for i, (w, b) in enumerate(params):
        f_i, f_o = w.shape
        f_i_p, f_o_p = _round_up(f_i, _LANE), _round_up(f_o, _LANE)
        w_p = jnp.pad(w, ((0, f_i_p - f_i), (0, f_o_p - f_o)))
        b_p = jnp.pad(b, ((0, 0), (0, f_o_p - f_o)))
        support = jnp.dot(h.astype(jnp.bfloat16).astype(jnp.float32),
                          w_p.astype(jnp.bfloat16).astype(jnp.float32),
                          precision=jax.lax.Precision.HIGHEST)
        support = support.astype(jnp.bfloat16).astype(jnp.float32)
        out = jnp.dot(adj_f32, support, precision=jax.lax.Precision.HIGHEST) + b_p
        if i != num_layers - 1:
            out = jnp.maximum(out, 0.0)
            if dropout_p > 0.0:
                keep = _dropout_keep_mask(out.shape, 0, f_o_p, seed + i, dropout_p)
                out = jnp.where(keep, out * (1.0 / (1.0 - dropout_p)), 0.0)
        h = out
    return h[:n, :params[-1][0].shape[1]]


if __name__ == "__main__":
    import numpy as np

    def normalize(a):
        d_inv_sqrt = 1.0 / jnp.sqrt(jnp.maximum(jnp.sum(a, axis=1), 1.0))
        return a * d_inv_sqrt[:, None] * d_inv_sqrt[None, :]

    key = jax.random.PRNGKey(0)

    # --- Test 1: padding path (N and feature dims not lane multiples) --------
    N, IN, HID, OUT, DROP = 200, 48, 64, 16, 0.5
    key, kx, ka, kp = jax.random.split(key, 4)
    x = jax.random.normal(kx, (N, IN), jnp.float32)
    a = (jax.random.uniform(ka, (N, N)) < 0.05).astype(jnp.float32)
    a = jnp.maximum(a, a.T) + jnp.eye(N, dtype=jnp.float32)
    adj = normalize(a)                      # densified D^-1/2 (A+I) D^-1/2
    params = init_gcn_params(kp, IN, HID, OUT, 2)

    out = jax.block_until_ready(gcn_forward(x, adj, params, dropout_p=DROP, seed=7))
    assert out.shape == (N, OUT) and out.dtype == jnp.float32
    ref = _reference_forward(x, adj, params, dropout_p=DROP, seed=7)
    np.testing.assert_allclose(np.asarray(out), np.asarray(ref), rtol=3e-2, atol=3e-2)

    # --- Test 2: block-sparse skip path (two disconnected 128-node clusters) -
    N2 = 256
    key, kx2, ka2, kp2 = jax.random.split(key, 4)
    x2 = jax.random.normal(kx2, (N2, IN), jnp.float32)
    a2 = (jax.random.uniform(ka2, (N2, N2)) < 0.05).astype(jnp.float32)
    same = (jnp.arange(N2)[:, None] // 128 == jnp.arange(N2)[None, :] // 128)
    a2 = (jnp.maximum(a2, a2.T) + jnp.eye(N2, dtype=jnp.float32)) * same
    adj2 = normalize(a2)                    # off-diagonal 128x128 blocks are zero
    params2 = init_gcn_params(kp2, IN, HID, OUT, 2)

    out2 = jax.block_until_ready(
        gcn_forward(x2, adj2, params2, dropout_p=DROP, seed=11, tile=128))
    ref2 = _reference_forward(x2, adj2, params2, dropout_p=DROP, seed=11, tile=128)
    np.testing.assert_allclose(np.asarray(out2), np.asarray(ref2), rtol=3e-2, atol=3e-2)

    print("KERNEL_OK")
</pallas_src>

<mosaic_0001>
module attributes {stable_mosaic.version = 11 : i64} {
  func.func @_xw_kernel(%arg0: i32, %arg1: memref<128x128xf32, #tpu.memory_space<vmem>>, %arg2: memref<128x128xf32, #tpu.memory_space<vmem>>, %arg3: memref<128x128xbf16, #tpu.memory_space<vmem>>) attributes {dimension_semantics = [#tpu.dimension_semantics<parallel>], iteration_bounds = array<i64: 2>, scalar_prefetch = 0 : i64, scratch_operands = 0 : i64, tpu.core_type = #tpu.core_type<tc>, window_params = [{transform_indices = @transform_0, window_bounds = array<i64: 128, 128>}, {pipeline_mode = #tpu.pipeline_mode<synchronous>, transform_indices = @transform_1, window_bounds = array<i64: 128, 128>}, {transform_indices = @transform_2, window_bounds = array<i64: 128, 128>}]} {
    %c0 = arith.constant 0 : index
    %c0_0 = arith.constant 0 : index
    %0 = vector.load %arg1[%c0, %c0_0] : memref<128x128xf32, #tpu.memory_space<vmem>>, vector<128x128xf32>
    %1 = arith.truncf %0 : vector<128x128xf32> to vector<128x128xbf16>
    %c0_1 = arith.constant 0 : index
    %c0_2 = arith.constant 0 : index
    %2 = vector.load %arg2[%c0_1, %c0_2] : memref<128x128xf32, #tpu.memory_space<vmem>>, vector<128x128xf32>
    %3 = arith.truncf %2 : vector<128x128xf32> to vector<128x128xbf16>
    %cst = arith.constant dense<0.000000e+00> : vector<128x128xf32>
    %4 = tpu.matmul %1, %3, %cst {dimension_numbers = #tpu.dot_dimension_numbers<[1], [0], [0], [1], [0, 0, 1, 1], [], []>} : vector<128x128xbf16>, vector<128x128xbf16>, vector<128x128xf32> -> vector<128x128xf32>
    %5 = arith.truncf %4 : vector<128x128xf32> to vector<128x128xbf16>
    %c0_3 = arith.constant 0 : index
    %c0_4 = arith.constant 0 : index
    %6 = vector.load %arg3[%c0_3, %c0_4] : memref<128x128xbf16, #tpu.memory_space<vmem>>, vector<128x128xbf16>
    tpu.vector_store %arg3[%c0_3, %c0_4], %5 {strides = array<i32>} : memref<128x128xbf16, #tpu.memory_space<vmem>>, vector<128x128xbf16>,
    return
  }
  func.func @transform_0(%arg0: i32) -> (i32, i32) {
    %c0_i32 = arith.constant 0 : i32
    %c0_i32_0 = arith.constant 0 : i32
    return %arg0, %c0_i32 : i32, i32
  }
  func.func @transform_1(%arg0: i32) -> (i32, i32) {
    %c0_i32 = arith.constant 0 : i32
    %c0_i32_0 = arith.constant 0 : i32
    %c0_i32_1 = arith.constant 0 : i32
    return %c0_i32, %c0_i32_0 : i32, i32
  }
  func.func @transform_2(%arg0: i32) -> (i32, i32) {
    %c0_i32 = arith.constant 0 : i32
    %c0_i32_0 = arith.constant 0 : i32
    return %arg0, %c0_i32 : i32, i32
  }
}

</mosaic_0001>

<llo_original>
// kernel: tpu_custom_call.1
$region0: #{tpu_custom_call.1}
  #allocation0 [shape = 'u32[]', space=smem, size = 0x4, offset = 0x4, fixed_abs, tag = 'smem constant byte address 0x4 - core index']
  #allocation1 [shape = 'u32[144,128]{1,0:T(1,128)}', space=vmem, size = 0x12000, scoped, tag = 'internal scratch']
  %s0 = inlined_call_operand.hbm [shape: f32[256,128], index: 0, kind: input, shape index: {}]
  %s1 = inlined_call_operand.hbm [shape: f32[128,128], index: 1, kind: input, shape index: {}]
  %s2 = inlined_call_operand.hbm [shape: bf16[256,128], index: 2, kind: output, shape index: {}]
  %s3 = sld [smem:[#allocation0]]
  $region49: #{tpu_custom_call.1} parent=0
    _
  %s5 = ssub.s32 1, %s3
  %s6 = scalar_select 0, %s5, %s3
  $region1: #{tpu_custom_call.1} parent=0
    #allocation2 [shape = 'u8[131072]{0}', space=vmem, size = 0x20000, scoped, tag = 'input window, operand 0']
    #allocation3 [shape = 's32[2]{0}', space=sflag, size = 0x8, scoped, tag = 'scoped memory for tpu_custom_call.1']
    #allocation4 [shape = 's32[2]{0}', space=sflag, size = 0x8, scoped, tag = 'scoped memory for tpu_custom_call.1']
    #allocation5 [shape = 'u8[65536]{0}', space=vmem, size = 0x10000, scoped, tag = 'input window, operand 1, single buffered']
    #allocation6 [shape = 's32[1]{0}', space=sflag, size = 0x4, scoped, tag = 'scoped memory for tpu_custom_call.1']
    #allocation7 [shape = 'u8[65536]{0}', space=vmem, size = 0x10000, scoped, tag = 'output window, operand 0']
    %7 = vsyncpa [#allocation3], 0
    %s8 = scalar_lea.sflag [#allocation3], 1
    %9 = vsyncpa %s8, 0
    %10 = vsyncpa [#allocation6], 0
    %11 = vsyncpa [#allocation4], 0
    %s12 = scalar_lea.sflag [#allocation4], 1
    %13 = vsyncpa %s12, 0
    loop: start=0, step=1, limit=4
    $region2: #{tpu_custom_call.1} parent=1 // loop_pre_header
      _
    $region3: #{tpu_custom_call.1} parent=1 // loop_header
      %s15 = sphi 0, %s19
      %p16 = scmp.ge.s32.totalorder %s15, 4
      %s25 = sphi 0, %s27
      %s28 = sphi 0, %s25
      %s29 = sphi 0, %s28
      %s45 = sphi 0, %s29
      %s49 = sphi 0, %s49
      %s51 = sphi 0, %s49
      %s52 = sphi 0, %s51
      %s66 = sphi 0, %s52
      %s72 = sphi 0, %s74
      %s75 = sphi 0, %s72
      %s76 = sphi 0, %s75
      %s92 = sphi 0, %s76
    $region4: #{tpu_custom_call.1} parent=1 // loop_header_branch
      %18 = sbr.rel (%p16) target = $region8
    $region5: #{tpu_custom_call.1} parent=1 // loop_body
      %s20 = ssub.s32 %s15, 1
      %s21 = ssub.s32 %s15, 2
      %s22 = sadd.s32 %s15, 1
      %s23 = ssub.s32 %s15, %s22
      %p24 = scmp.eq.s32.totalorder %s23, 0
      %s26 = sadd.s32 %s25, 1
      %s27 = scalar_select %p24, %s25, %s26
      %p30 = pneg %p24
      %p31 = scmp.eq.s32.totalorder %s15, 1
      %p32 = por %p30, %p31
      %p33 = scmp.ne.s32.totalorder %s25, %s28
      %p34 = scmp.eq.s32.totalorder %s15, 0
      %p35 = por %p33, %p34
      %p36 = scmp.ne.s32.totalorder %s25, %s28
      %p37 = scmp.eq.s32.totalorder %s20, 1
      %p38 = por %p36, %p37
      %p39 = scmp.ne.s32.totalorder %s28, %s29
      %p40 = scmp.eq.s32.totalorder %s20, 0
      %p41 = por %p39, %p40
      %p42 = scmp.ne.s32.totalorder %s28, %s29
      %p43 = scmp.eq.s32.totalorder %s21, 1
      %p44 = por %p42, %p43
      %p46 = scmp.ne.s32.totalorder %s29, %s45
      %p47 = scmp.eq.s32.totalorder %s21, 0
      %p48 = por %p46, %p47
      %s50 = sadd.s32 %s49, 1
      %p53 = scmp.eq.s32.totalorder %s15, 1
      %p54 = scmp.ne.s32.totalorder %s49, %s51
      %p55 = scmp.eq.s32.totalorder %s15, 0
      %p56 = por %p54, %p55
      %p57 = scmp.ne.s32.totalorder %s49, %s51
      %p58 = scmp.eq.s32.totalorder %s20, 1
      %p59 = por %p57, %p58
      %p60 = scmp.ne.s32.totalorder %s51, %s52
      %p61 = scmp.eq.s32.totalorder %s20, 0
      %p62 = por %p60, %p61
      %p63 = scmp.ne.s32.totalorder %s51, %s52
      %p64 = scmp.eq.s32.totalorder %s21, 1
      %p65 = por %p63, %p64
      %p67 = scmp.ne.s32.totalorder %s52, %s66
      %p68 = scmp.eq.s32.totalorder %s21, 0
      %p69 = por %p67, %p68
      %s70 = ssub.s32 %s15, %s22
      %p71 = scmp.eq.s32.totalorder %s70, 0
      %s73 = sadd.s32 %s72, 1
      %s74 = scalar_select %p71, %s72, %s73
      %p77 = pneg %p71
      %p78 = scmp.eq.s32.totalorder %s15, 1
      %p79 = por %p77, %p78
      %p80 = scmp.ne.s32.totalorder %s72, %s75
      %p81 = scmp.eq.s32.totalorder %s15, 0
      %p82 = por %p80, %p81
      %p83 = scmp.ne.s32.totalorder %s72, %s75
      %p84 = scmp.eq.s32.totalorder %s20, 1
      %p85 = por %p83, %p84
      %p86 = scmp.ne.s32.totalorder %s75, %s76
      %p87 = scmp.eq.s32.totalorder %s20, 0
      %p88 = por %p86, %p87
      %p89 = scmp.ne.s32.totalorder %s75, %s76
      %p90 = scmp.eq.s32.totalorder %s21, 1
      %p91 = por %p89, %p90
      %p93 = scmp.ne.s32.totalorder %s76, %s92
      %p94 = scmp.eq.s32.totalorder %s21, 0
      %p95 = por %p93, %p94
      %p96 = scmp.le.s32.totalorder 1, %s15
      %p97 = scmp.lt.s32.totalorder %s15, 3
      %p98 = pnand %p96, %p97
      %p99 = pneg %p98
      // Predicated region
      $region9: #{tpu_custom_call.1} parent=5 // pred_check
        _
      $region10: #{tpu_custom_call.1} parent=5 // pred_check_branch
        %101 = sbr.rel (%p98) target = $region12
      $region11: #{tpu_custom_call.1} parent=5 // pred_region
        %s102 = ssub.s32 %s15, 1
        // Predicated region
        $region13: #{tpu_custom_call.1} parent=11 // pred_check
          %p103 = pneg %p62
        $region14: #{tpu_custom_call.1} parent=11 // pred_check_branch
          %105 = sbr.rel (%p103) target = $region16
        $region15: #{tpu_custom_call.1} parent=11 // pred_region
          %s107 = ssub.s32 2048, 2048
          %108 = vsyncadd [#allocation6], %s107
          %s109 = sshll.u32 [#allocation5], 4
          %s110 = int_to_ptr.vmem [resolvable:$true] %s109
          %115 = dma.hbm_to_vmem [thread:$0]  %s1, 2048, %s110, [#allocation6], 128, 128, 8
        $region16: #{tpu_custom_call.1} parent=11 // pred_fallthru
          _
      $region12: #{tpu_custom_call.1} parent=5 // pred_fallthru
        _
      %p116 = scmp.lt.s32.totalorder %s15, 2
      // Predicated region
      $region17: #{tpu_custom_call.1} parent=5 // pred_check
        %p117 = pneg %p116
      $region18: #{tpu_custom_call.1} parent=5 // pred_check_branch
        %119 = sbr.rel (%p117) target = $region20
      $region19: #{tpu_custom_call.1} parent=5 // pred_region
        // Predicated region
        $region21: #{tpu_custom_call.1} parent=19 // pred_check
          %p120 = pneg %p35
        $region22: #{tpu_custom_call.1} parent=19 // pred_check_branch
          %122 = sbr.rel (%p120) target = $region24
        $region23: #{tpu_custom_call.1} parent=19 // pred_region
          %s123 = sand.u32 %s25, 1
          %s124 = scalar_lea.sflag [#allocation3], %s123
          %s125 = sand.u32 %s25, 1
          %s126 = smul.addr %s125, 128
          %s127 = scalar_lea.vmem [#allocation2], %s126
          %s128 = smul.u32 16, %s15
          %s130 = ssub.s32 2048, 2048
          %131 = vsyncadd %s124, %s130
          %s132 = smul.addr %s128, 128
          %s133 = scalar_lea.hbm %s0, %s132
          %s134 = sshll.u32 %s127, 4
          %s135 = int_to_ptr.vmem [resolvable:$true] %s134
          %140 = dma.hbm_to_vmem [thread:$0]  %s133, 2048, %s135, %s124, 128, 128, 8
        $region24: #{tpu_custom_call.1} parent=19 // pred_fallthru
          _
      $region20: #{tpu_custom_call.1} parent=5 // pred_fallthru
        _
      %p141 = scmp.le.s32.totalorder 1, %s15
      %p142 = scmp.lt.s32.totalorder %s15, 3
      %p143 = pnand %p141, %p142
      %p144 = pneg %p143
      // Predicated region
      $region25: #{tpu_custom_call.1} parent=5 // pred_check
        _
      $region26: #{tpu_custom_call.1} parent=5 // pred_check_branch
        %146 = sbr.rel (%p143) target = $region28
      $region27: #{tpu_custom_call.1} parent=5 // pred_region
        %s147 = ssub.s32 %s15, 1
        %s148 = sand.u32 %s28, 1
        %s149 = scalar_lea.sflag [#allocation3], %s148
        %s150 = sand.u32 %s28, 1
        %s151 = smul.addr %s150, 128
        %s152 = scalar_lea.vmem [#allocation2], %s151
        // Predicated region
        $region29: #{tpu_custom_call.1} parent=27 // pred_check
          %p153 = pneg %p41
        $region30: #{tpu_custom_call.1} parent=27 // pred_check_branch
          %155 = sbr.rel (%p153) target = $region32
        $region31: #{tpu_custom_call.1} parent=27 // pred_region
          %156 = dma.done %s149, 2048
        $region32: #{tpu_custom_call.1} parent=27 // pred_fallthru
          _
        // Predicated region
        $region33: #{tpu_custom_call.1} parent=27 // pred_check
          %p157 = pneg %p62
        $region34: #{tpu_custom_call.1} parent=27 // pred_check_branch
          %159 = sbr.rel (%p157) target = $region36
        $region35: #{tpu_custom_call.1} parent=27 // pred_region
          %160 = dma.done [#allocation6], 2048
        $region36: #{tpu_custom_call.1} parent=27 // pred_fallthru
          _
        %s161 = sand.u32 %s28, 1
        %s162 = scalar_lea.sflag [#allocation3], %s161
        %s163 = sand.u32 %s28, 1
        %s164 = smul.addr %s163, 128
        %s165 = scalar_lea.vmem [#allocation2], %s164
        %p166 = pneg %p41
        %p167 = pneg %p38
        %p168 = pneg %p62
        %p169 = pneg %p59
        %p170 = pneg %p88
        %p171 = pneg %p85
        %s172 = sand.u32 %s75, 1
        %s173 = scalar_lea.sflag [#allocation4], %s172
        %s174 = sand.u32 %s75, 1
        %s175 = smul.addr %s174, 64
        %s176 = scalar_lea.vmem [#allocation7], %s175
        %s177 = smul.u32 16, %s20
        %s178 = smul.u32 16, %s20
        %v180 = vld [vmem:[%s152] sm:$0xff]
        %v181 = vld [vmem:[%s152 + $0x8] sm:$0xff]
        %v182 = vld [vmem:[%s152 + $0x10] sm:$0xff]
        %v183 = vld [vmem:[%s152 + $0x18] sm:$0xff]
        %v184 = vld [vmem:[%s152 + $0x20] sm:$0xff]
        %v185 = vld [vmem:[%s152 + $0x28] sm:$0xff]
        %v186 = vld [vmem:[%s152 + $0x30] sm:$0xff]
        %v187 = vld [vmem:[%s152 + $0x38] sm:$0xff]
        %v188 = vld [vmem:[%s152 + $0x40] sm:$0xff]
        %v189 = vld [vmem:[%s152 + $0x48] sm:$0xff]
        %v190 = vld [vmem:[%s152 + $0x50] sm:$0xff]
        %v191 = vld [vmem:[%s152 + $0x58] sm:$0xff]
        %v192 = vld [vmem:[%s152 + $0x60] sm:$0xff]
        %v193 = vld [vmem:[%s152 + $0x68] sm:$0xff]
        %v194 = vld [vmem:[%s152 + $0x70] sm:$0xff]
        %v195 = vld [vmem:[%s152 + $0x78] sm:$0xff]
        %v196 = vpack.c.bf16 %v181, %v180
        %v197 = vpack.c.bf16 %v183, %v182
        %v198 = vpack.c.bf16 %v185, %v184
        %v199 = vpack.c.bf16 %v187, %v186
        %v200 = vpack.c.bf16 %v189, %v188
        %v201 = vpack.c.bf16 %v191, %v190
        %v202 = vpack.c.bf16 %v193, %v192
        %v203 = vpack.c.bf16 %v195, %v194
        %v204 = vld [vmem:[#allocation5] sm:$0xff]
        %v205 = vld [vmem:[#allocation5 + $0x8] sm:$0xff]
        %v206 = vld [vmem:[#allocation5 + $0x10] sm:$0xff]
        %v207 = vld [vmem:[#allocation5 + $0x18] sm:$0xff]
        %v208 = vld [vmem:[#allocation5 + $0x20] sm:$0xff]
        %v209 = vld [vmem:[#allocation5 + $0x28] sm:$0xff]
        %v210 = vld [vmem:[#allocation5 + $0x30] sm:$0xff]
        %v211 = vld [vmem:[#allocation5 + $0x38] sm:$0xff]
        %v212 = vld [vmem:[#allocation5 + $0x40] sm:$0xff]
        %v213 = vld [vmem:[#allocation5 + $0x48] sm:$0xff]
        %v214 = vld [vmem:[#allocation5 + $0x50] sm:$0xff]
        %v215 = vld [vmem:[#allocation5 + $0x58] sm:$0xff]
        %v216 = vld [vmem:[#allocation5 + $0x60] sm:$0xff]
        %v217 = vld [vmem:[#allocation5 + $0x68] sm:$0xff]
        %v218 = vld [vmem:[#allocation5 + $0x70] sm:$0xff]
        %v219 = vld [vmem:[#allocation5 + $0x78] sm:$0xff]
        %v220 = vpack.c.bf16 %v205, %v204
        %v221 = vpack.c.bf16 %v207, %v206
        %v222 = vpack.c.bf16 %v209, %v208
        %v223 = vpack.c.bf16 %v211, %v210
        %v224 = vpack.c.bf16 %v213, %v212
        %v225 = vpack.c.bf16 %v215, %v214
        %v226 = vpack.c.bf16 %v217, %v216
        %v227 = vpack.c.bf16 %v219, %v218
        %228 = vmatprep.subr.bf16.mxu0 0
        %229 = vmatpush1.bf16.msra.mxu0 %v227
        %230 = vmatprep.subr.bf16.mxu0 0
        %231 = vmatpush1.bf16.msra.mxu0 %v226
        %232 = vmatprep.subr.bf16.mxu0 0
        %233 = vmatpush1.bf16.msra.mxu0 %v225
        %234 = vmatprep.subr.bf16.mxu0 0
        %235 = vmatpush1.bf16.msra.mxu0 %v224
        %236 = vmatprep.subr.bf16.mxu0 0
        %237 = vmatpush1.bf16.msra.mxu0 %v223
        %238 = vmatprep.subr.bf16.mxu0 0
        %239 = vmatpush1.bf16.msra.mxu0 %v222
        %240 = vmatprep.subr.bf16.mxu0 0
        %241 = vmatpush1.bf16.msra.mxu0 %v221
        %242 = vmatprep.subr.bf16.mxu0 0
        %243 = vmatpush1.bf16.msra.mxu0 %v220
        %244 = vmatprep.subr.bf16.mxu0 0
        %245 = vmatpush2.bf16.msra.mxu0 0
        %246 = vmatprep.subr.bf16.mxu0 0
        %247 = vmatpush2.bf16.msra.mxu0 0
        %248 = vmatprep.subr.bf16.mxu0 0
        %249 = vmatpush2.bf16.msra.mxu0 0
        %250 = vmatprep.subr.bf16.mxu0 0
        %251 = vmatpush2.bf16.msra.mxu0 0
        %252 = vmatprep.subr.bf16.mxu0 0
        %253 = vmatpush2.bf16.msra.mxu0 0
        %254 = vmatprep.subr.bf16.mxu0 0
        %255 = vmatpush2.bf16.msra.mxu0 0
        %256 = vmatprep.subr.bf16.mxu0 0
        %257 = vmatpush2.bf16.msra.mxu0 0
        %258 = vmatprep.subr.bf16.mxu0 0
        %259 = vmatpush2.bf16.msra.mxu0 0
        %260 = vmatprep.mubr.bf16.mxu0 0
        %261 = vmatmul.mubr.bf16.gmra.mxu0 %v196
        %v262 = vpop.f32.mrf.mxu0
        %v263 = vadd.f32 0.0, %v262
        %v264 = vpop.f32.mrf.mxu0
        %v265 = vpop.f32.mrf.mxu0
        %v266 = vadd.f32 0.0, %v265
        %v267 = vpop.f32.mrf.mxu0
        %268 = vmatprep.mubr.bf16.mxu0 0
        %269 = vmatmul.mubr.bf16.gmra.mxu0 %v197
        %v270 = vpop.f32.mrf.mxu0
        %v271 = vadd.f32 0.0, %v270
        %v272 = vpop.f32.mrf.mxu0
        %v273 = vpop.f32.mrf.mxu0
        %v274 = vadd.f32 0.0, %v273
        %v275 = vpop.f32.mrf.mxu0
        %276 = vmatprep.mubr.bf16.mxu0 0
        %277 = vmatmul.mubr.bf16.gmra.mxu0 %v198
        %v278 = vpop.f32.mrf.mxu0
        %v279 = vadd.f32 0.0, %v278
        %v280 = vpop.f32.mrf.mxu0
        %v281 = vpop.f32.mrf.mxu0
        %v282 = vadd.f32 0.0, %v281
        %v283 = vpop.f32.mrf.mxu0
        %284 = vmatprep.mubr.bf16.mxu0 0
        %285 = vmatmul.mubr.bf16.gmra.mxu0 %v199
        %v286 = vpop.f32.mrf.mxu0
        %v287 = vadd.f32 0.0, %v286
        %v288 = vpop.f32.mrf.mxu0
        %v289 = vpop.f32.mrf.mxu0
        %v290 = vadd.f32 0.0, %v289
        %v291 = vpop.f32.mrf.mxu0
        %292 = vmatprep.mubr.bf16.mxu0 0
        %293 = vmatmul.mubr.bf16.gmra.mxu0 %v200
        %v294 = vpop.f32.mrf.mxu0
        %v295 = vadd.f32 0.0, %v294
        %v296 = vpop.f32.mrf.mxu0
        %v297 = vpop.f32.mrf.mxu0
        %v298 = vadd.f32 0.0, %v297
        %v299 = vpop.f32.mrf.mxu0
        %300 = vmatprep.mubr.bf16.mxu0 0
        %301 = vmatmul.mubr.bf16.gmra.mxu0 %v201
        %v302 = vpop.f32.mrf.mxu0
        %v303 = vadd.f32 0.0, %v302
        %v304 = vpop.f32.mrf.mxu0
        %v305 = vpop.f32.mrf.mxu0
        %v306 = vadd.f32 0.0, %v305
        %v307 = vpop.f32.mrf.mxu0
        %308 = vmatprep.mubr.bf16.mxu0 0
        %309 = vmatmul.mubr.bf16.gmra.mxu0 %v202
        %v310 = vpop.f32.mrf.mxu0
        %v311 = vadd.f32 0.0, %v310
        %v312 = vpop.f32.mrf.mxu0
        %v313 = vpop.f32.mrf.mxu0
        %v314 = vadd.f32 0.0, %v313
        %v315 = vpop.f32.mrf.mxu0
        %316 = vmatprep.mubr.bf16.mxu0 0
        %317 = vmatmul.mubr.bf16.gmra.mxu0 %v203
        %v318 = vpop.f32.mrf.mxu0
        %v319 = vadd.f32 0.0, %v318
        %v320 = vpop.f32.mrf.mxu0
        %v321 = vpop.f32.mrf.mxu0
        %v322 = vadd.f32 0.0, %v321
        %v323 = vpop.f32.mrf.mxu0
        %324 = vdwg.mxu0
        %v325 = vpack.c.bf16 %v266, %v263
        %v326 = vpack.c.bf16 %v274, %v271
        %v327 = vpack.c.bf16 %v282, %v279
        %v328 = vpack.c.bf16 %v290, %v287
        %v329 = vpack.c.bf16 %v298, %v295
        %v330 = vpack.c.bf16 %v306, %v303
        %v331 = vpack.c.bf16 %v314, %v311
        %v332 = vpack.c.bf16 %v322, %v319
        %v341 = vunpack.c.l.b16 %v325
        %v342 = vunpack.c.h.b16 %v325
        %v343 = vunpack.c.l.b16 %v326
        %v344 = vunpack.c.h.b16 %v326
        %v345 = vunpack.c.l.b16 %v327
        %v346 = vunpack.c.h.b16 %v327
        %v347 = vunpack.c.l.b16 %v328
        %v348 = vunpack.c.h.b16 %v328
        %v349 = vunpack.c.l.b16 %v329
        %v350 = vunpack.c.h.b16 %v329
        %v351 = vunpack.c.l.b16 %v330
        %v352 = vunpack.c.h.b16 %v330
        %v353 = vunpack.c.l.b16 %v331
        %v354 = vunpack.c.h.b16 %v331
        %v355 = vunpack.c.l.b16 %v332
        %v356 = vunpack.c.h.b16 %v332
        %v357 = vpack.c.b16 %v341, %v341
        %v358 = vpack.c.b16 %v342, %v342
        %v359 = vpack.c.b16 %v343, %v343
        %v360 = vpack.c.b16 %v344, %v344
        %v361 = vpack.c.b16 %v345, %v345
        %v362 = vpack.c.b16 %v346, %v346
        %v363 = vpack.c.b16 %v347, %v347
        %v364 = vpack.c.b16 %v348, %v348
        %v365 = vpack.c.b16 %v349, %v349
        %v366 = vpack.c.b16 %v350, %v350
        %v367 = vpack.c.b16 %v351, %v351
        %v368 = vpack.c.b16 %v352, %v352
        %v369 = vpack.c.b16 %v353, %v353
        %v370 = vpack.c.b16 %v354, %v354
        %v371 = vpack.c.b16 %v355, %v355
        %v372 = vpack.c.b16 %v356, %v356
        %389 = vst [vmem:[%s176] sm:$0xf] %v357
        %390 = vst [vmem:[%s176 + $0x4] sm:$0xf] %v358
        %391 = vst [vmem:[%s176 + $0x8] sm:$0xf] %v359
        %392 = vst [vmem:[%s176 + $0xc] sm:$0xf] %v360
        %393 = vst [vmem:[%s176 + $0x10] sm:$0xf] %v361
        %394 = vst [vmem:[%s176 + $0x14] sm:$0xf] %v362
        %395 = vst [vmem:[%s176 + $0x18] sm:$0xf] %v363
        %396 = vst [vmem:[%s176 + $0x1c] sm:$0xf] %v364
        %397 = vst [vmem:[%s176 + $0x20] sm:$0xf] %v365
        %398 = vst [vmem:[%s176 + $0x24] sm:$0xf] %v366
        %399 = vst [vmem:[%s176 + $0x28] sm:$0xf] %v367
        %400 = vst [vmem:[%s176 + $0x2c] sm:$0xf] %v368
        %401 = vst [vmem:[%s176 + $0x30] sm:$0xf] %v369
        %402 = vst [vmem:[%s176 + $0x34] sm:$0xf] %v370
        %403 = vst [vmem:[%s176 + $0x38] sm:$0xf] %v371
        %404 = vst [vmem:[%s176 + $0x3c] sm:$0xf] %v372
        %s405 = sand.u32 %s75, 1
        %s406 = scalar_lea.sflag [#allocation4], %s405
        %s407 = sand.u32 %s75, 1
        %s408 = smul.addr %s407, 64
        %s409 = scalar_lea.vmem [#allocation7], %s408
        // Predicated region
        $region37: #{tpu_custom_call.1} parent=27 // pred_check
          %p410 = pneg %p85
        $region38: #{tpu_custom_call.1} parent=27 // pred_check_branch
          %412 = sbr.rel (%p410) target = $region40
        $region39: #{tpu_custom_call.1} parent=27 // pred_region
          %s413 = smul.u32 16, %s20
          %s415 = ssub.s32 1024, 1024
          %416 = vsyncadd %s406, %s415
          %s417 = smul.addr %s413, 64
          %s418 = scalar_lea.hbm %s2, %s417
          %s419 = sshll.u32 %s409, 4
          %s420 = int_to_ptr.vmem [resolvable:$true] %s419
          %425 = dma.vmem_to_hbm [thread:$0]  %s420, 1024, %s418, %s406, 64, 64, 4
        $region40: #{tpu_custom_call.1} parent=27 // pred_fallthru
          _
      $region28: #{tpu_custom_call.1} parent=5 // pred_fallthru
        _
      %p426 = scmp.le.s32.totalorder 2, %s15
      // Predicated region
      $region41: #{tpu_custom_call.1} parent=5 // pred_check
        %p427 = pneg %p426
      $region42: #{tpu_custom_call.1} parent=5 // pred_check_branch
        %429 = sbr.rel (%p427) target = $region44
      $region43: #{tpu_custom_call.1} parent=5 // pred_region
        %s430 = ssub.s32 %s15, 2
        // Predicated region
        $region45: #{tpu_custom_call.1} parent=43 // pred_check
          %p431 = pneg %p91
        $region46: #{tpu_custom_call.1} parent=43 // pred_check_branch
          %433 = sbr.rel (%p431) target = $region48
        $region47: #{tpu_custom_call.1} parent=43 // pred_region
          %s434 = sand.u32 %s76, 1
          %s435 = scalar_lea.sflag [#allocation4], %s434
          %s436 = sand.u32 %s76, 1
          %s437 = smul.addr %s436, 64
          %s438 = scalar_lea.vmem [#allocation7], %s437
          %439 = dma.done %s435, 1024
        $region48: #{tpu_custom_call.1} parent=43 // pred_fallthru
          _
      $region44: #{tpu_custom_call.1} parent=5 // pred_fallthru
        _
    $region6: #{tpu_custom_call.1} parent=1 // loop_footer
      %s19 = sadd.s32 1, %s15
    $region7: #{tpu_custom_call.1} parent=1 // loop_footer_branch
      %14 = sbr.rel target = $region3
    $region8: #{tpu_custom_call.1} parent=1 // loop_exit
      _
    %440 = vsyncpa [#allocation3], 1
    %s441 = scalar_lea.sflag [#allocation3], 1
    %442 = vsyncpa %s441, 1
    %443 = vsyncpa [#allocation6], 1
    %444 = vsyncpa [#allocation4], 1
    %s445 = scalar_lea.sflag [#allocation4], 1
    %446 = vsyncpa %s445, 1

</llo_original>
